<compile_context>
chip_gen: v6e
topology: v6e:2x2x1
jax: 0.10.0
libtpu: 0.0.40
codegen_flags: <defaults>
</compile_context>

<pallas_src>
from functools import partial
from math import sqrt

import jax
import jax.numpy as jnp
from jax import lax
from jax.experimental import pallas as pl
from jax.experimental.pallas import tpu as pltpu

MIB = 1024 * 1024


def _vmem_capacity_bytes():
    try:
        return int(pltpu.get_tpu_info().vmem_capacity_bytes)
    except Exception:
        return 64 * MIB  # conservative default (v7x per-core VMEM)


_VMEM_CAP = _vmem_capacity_bytes()
# Scoped-VMEM limit handed to Mosaic: ~96 MiB on 128-MiB parts (v5e/v6e),
# ~56 MiB on v7x (64 MiB physical).
_VMEM_LIMIT = int(min(_VMEM_CAP - 8 * MIB, 96 * MIB))
# Budget for keeping a (double-buffered) projection weight VMEM-resident.
_RESIDENT_BUDGET = int(_VMEM_LIMIT * 0.6)


# ----------------------------------------------------------------------------
# small helpers
# ----------------------------------------------------------------------------
def _round_up(x, m):
    return ((x + m - 1) // m) * m


def _pick_tile(dim, target, granule):
    """Largest multiple of `granule` <= target dividing `dim`; else full extent."""
    if dim <= target:
        return dim
    t = (target // granule) * granule
    while t >= granule:
        if dim % t == 0:
            return t
        t -= granule
    return dim


def _seq_tile(s, target):
    """Single (8-aligned) tile for short sequences; lane-dense (multiple-of-128)
    tiles with zero padding of the remainder otherwise."""
    if s <= target:
        return _round_up(s, 8)
    return target


def _weight_resident_ok(k, n, tm):
    # double-buffered bf16 weight + x/out tiles must fit the resident budget
    est = 2 * (k * n * 2) + 2 * (tm * k * 2) + 2 * (tm * n * 4) + 4 * n
    return est <= _RESIDENT_BUDGET


# ----------------------------------------------------------------------------
# Linear kernels:  y = x @ W + b   (W already (in, out), bf16)
# ----------------------------------------------------------------------------
def _linear_resident_kernel(x_ref, w_ref, b_ref, o_ref):
    # Weight block is full-extent with a constant index_map -> DMA'd once and
    # VMEM-resident; x/out stream along the M grid axis.
    o_ref[...] = (
        jnp.dot(x_ref[...], w_ref[...], preferred_element_type=jnp.float32)
        + b_ref[...]
    ).astype(o_ref.dtype)


def _linear_tiled_kernel(x_ref, w_ref, b_ref, o_ref, acc_ref):
    # Fallback for weights too large to keep resident: K-tiled with an f32
    # VMEM accumulator and pl.when init/finalize on the K axis.
    @pl.when(pl.program_id(2) == 0)
    def _():
        acc_ref[...] = jnp.zeros_like(acc_ref)

    acc_ref[...] += jnp.dot(
        x_ref[...], w_ref[...], preferred_element_type=jnp.float32
    )

    @pl.when(pl.program_id(2) == pl.num_programs(2) - 1)
    def _():
        o_ref[...] = (acc_ref[...] + b_ref[...]).astype(o_ref.dtype)


def linear(x2d, w_t, b_row, *, out_dtype=jnp.bfloat16):
    """x2d: (M, K); w_t: (K, N) bf16; b_row: (1, N) f32  ->  (M, N)."""
    m, k = x2d.shape
    k2, n = w_t.shape
    assert k == k2
    x_bf = x2d.astype(jnp.bfloat16)
    w_bf = w_t.astype(jnp.bfloat16)

    tm = min(512, _round_up(m, 8))
    m_pad = _round_up(m, tm)
    if m_pad != m:
        x_bf = jnp.pad(x_bf, ((0, m_pad - m), (0, 0)))

    if _weight_resident_ok(k, n, tm):
        out = pl.pallas_call(
            _linear_resident_kernel,
            out_shape=jax.ShapeDtypeStruct((m_pad, n), out_dtype),
            grid_spec=pltpu.PrefetchScalarGridSpec(
                num_scalar_prefetch=0,
                grid=(m_pad // tm,),
                in_specs=[
                    pl.BlockSpec((tm, k), lambda i: (i, 0)),
                    pl.BlockSpec((k, n), lambda i: (0, 0)),   # resident weight
                    pl.BlockSpec((1, n), lambda i: (0, 0)),
                ],
                out_specs=pl.BlockSpec((tm, n), lambda i: (i, 0)),
            ),
            compiler_params=pltpu.CompilerParams(
                dimension_semantics=("parallel",),
                vmem_limit_bytes=_VMEM_LIMIT,
            ),
        )(x_bf, w_bf, b_row)
    else:
        # TODO(synk): non-divisible K/N in this fallback still uses a
        # full-extent block; pad K/N here if such shapes ever appear.
        tk = _pick_tile(k, 1024, 128)
        tn = _pick_tile(n, 512, 128)
        out = pl.pallas_call(
            _linear_tiled_kernel,
            out_shape=jax.ShapeDtypeStruct((m_pad, n), out_dtype),
            grid_spec=pltpu.PrefetchScalarGridSpec(
                num_scalar_prefetch=0,
                grid=(m_pad // tm, n // tn, k // tk),
                in_specs=[
                    pl.BlockSpec((tm, tk), lambda i, j, kk: (i, kk)),
                    pl.BlockSpec((tk, tn), lambda i, j, kk: (kk, j)),
                    pl.BlockSpec((1, tn), lambda i, j, kk: (0, j)),
                ],
                out_specs=pl.BlockSpec((tm, tn), lambda i, j, kk: (i, j)),
                scratch_shapes=[pltpu.VMEM((tm, tn), jnp.float32)],
            ),
            compiler_params=pltpu.CompilerParams(
                dimension_semantics=("parallel", "parallel", "arbitrary"),
                vmem_limit_bytes=_VMEM_LIMIT,
            ),
        )(x_bf, w_bf, b_row)
    return out[:m] if m_pad != m else out


def fused_qkv_projection(x2d, w_qkv, b_qkv, *, out_dtype=jnp.bfloat16):
    """x2d: (M, D); w_qkv: (3, D, D) bf16 (Q scale folded); b_qkv: (3, 1, D) f32.
    Returns packed (3, M, D): the three projections are emitted via the
    out_spec index map so downstream never slices/copies the activations.
    The weight axis is outermost, so each (D, D) slab is DMA'd once and stays
    VMEM-resident while the M axis streams past it (x is read 3x, weights 1x).
    """
    m, k = x2d.shape
    three, k2, n = w_qkv.shape
    assert three == 3 and k2 == k
    x_bf = x2d.astype(jnp.bfloat16)

    tm = min(512, _round_up(m, 8))
    m_pad = _round_up(m, tm)
    if m_pad != m:
        x_bf = jnp.pad(x_bf, ((0, m_pad - m), (0, 0)))

    out = pl.pallas_call(
        _linear_resident_kernel,
        out_shape=jax.ShapeDtypeStruct((3, m_pad, n), out_dtype),
        grid_spec=pltpu.PrefetchScalarGridSpec(
            num_scalar_prefetch=0,
            grid=(3, m_pad // tm),
            in_specs=[
                pl.BlockSpec((tm, k), lambda w, i: (i, 0)),
                pl.BlockSpec((None, k, n), lambda w, i: (w, 0, 0)),
                pl.BlockSpec((None, 1, n), lambda w, i: (w, 0, 0)),
            ],
            out_specs=pl.BlockSpec((None, tm, n), lambda w, i: (w, i, 0)),
        ),
        compiler_params=pltpu.CompilerParams(
            dimension_semantics=("parallel", "parallel"),
            vmem_limit_bytes=_VMEM_LIMIT,
        ),
    )(x_bf, w_qkv, b_qkv)
    return out[:, :m] if m_pad != m else out


# ----------------------------------------------------------------------------
# Flash attention on the packed-head layout.
#   q_ref : (tq, d_model) bf16      k_ref / v_ref : (tk, d_model) bf16
#   o_ref : (tq, d_model)           m/l : (H, tq, 1) f32   acc : (tq, d_model) f32
# Heads are static lane slices of the packed blocks -> no HBM head split/merge
# and a lane-dense (full d_model) output store.  1/sqrt(depth) is folded into
# the Q projection weights.
# ----------------------------------------------------------------------------
def _flash_attn_kernel(q_ref, k_ref, v_ref, o_ref, m_ref, l_ref, acc_ref, *,
                       num_heads, depth, kv_tile, kv_len, exp_dtype):
    ki = pl.program_id(2)

    @pl.when(ki == 0)
    def _():
        m_ref[...] = jnp.full(m_ref.shape, -jnp.inf, jnp.float32)
        l_ref[...] = jnp.zeros_like(l_ref)
        acc_ref[...] = jnp.zeros_like(acc_ref)

    needs_mask = (kv_len % kv_tile) != 0  # trace-time constant (seq padding)
    if needs_mask:
        col = ki * kv_tile + lax.broadcasted_iota(jnp.int32, (1, kv_tile), 1)
        col_ok = col < kv_len

    for h in range(num_heads):
        sl = pl.ds(h * depth, depth)
        q_h = q_ref[:, sl]                          # (tq, depth) bf16
        k_h = k_ref[:, sl]                          # (tk, depth) bf16
        v_h = v_ref[:, sl]

        # s = q_h @ k_h.T without materializing a transpose
        s = lax.dot_general(q_h, k_h, (((1,), (1,)), ((), ())),
                            preferred_element_type=jnp.float32)  # (tq, tk)
        if needs_mask:
            s = jnp.where(col_ok, s, -1e30)
        # TODO(synk): a user-supplied attention mask (torch `mask` arg) would be
        # applied to `s` here per KV tile; the module is exercised with mask=None.

        m_prev = m_ref[h]                           # (tq, 1) f32
        m_new = jnp.maximum(m_prev, jnp.max(s, axis=-1, keepdims=True))
        alpha = jnp.exp(m_prev - m_new)             # f32 (tiny)
        # exp on the EUP; bf16 roughly doubles exp throughput on v6e/v7x.
        # Keep f32 on v5e (no bf16 EUP) via exp_dtype=jnp.float32.
        p = jnp.exp((s - m_new).astype(exp_dtype))

        l_ref[h] = alpha * l_ref[h] + jnp.sum(
            p.astype(jnp.float32), axis=-1, keepdims=True)
        pv = lax.dot_general(p.astype(jnp.bfloat16), v_h,
                             (((1,), (0,)), ((), ())),
                             preferred_element_type=jnp.float32)  # (tq, depth)
        acc_ref[:, sl] = alpha * acc_ref[:, sl] + pv
        m_ref[h] = m_new

    @pl.when(ki == pl.num_programs(2) - 1)
    def _():
        for h in range(num_heads):
            sl = pl.ds(h * depth, depth)
            inv_l = pl.reciprocal(l_ref[h], approx=True)
            o_ref[:, sl] = (acc_ref[:, sl] * inv_l).astype(o_ref.dtype)


def attention_core(q_src, k_src, v_src, leads, num_heads, *,
                   exp_dtype=jnp.bfloat16, out_dtype=jnp.bfloat16):
    """q/k/v_src: rank-4 (G, B, S, d_model) bf16 arrays (may all be the SAME
    packed QKV array); `leads` selects each input's index on the G axis.
    Returns the merged-head context (B, Sq, d_model)."""
    _, bsz, sq, d = q_src.shape
    sk = k_src.shape[2]
    depth = d // num_heads

    tq = _seq_tile(sq, 256)
    tk = _seq_tile(sk, 512)     # lane-dense (128-multiple) KV tiles when tiled
    sq_pad = _round_up(sq, tq)
    sk_pad = _round_up(sk, tk)

    def pad_seq(x, s_target):
        s_cur = x.shape[2]
        if s_cur >= s_target:
            return x
        return jnp.pad(x, ((0, 0), (0, 0), (0, s_target - s_cur), (0, 0)))

    if (q_src is k_src) and (k_src is v_src):
        packed = pad_seq(q_src, max(sq_pad, sk_pad))
        q_in = k_in = v_in = packed
    else:
        q_in = pad_seq(q_src, sq_pad)
        k_in = pad_seq(k_src, sk_pad)
        v_in = pad_seq(v_src, sk_pad)

    lq, lk, lv = leads
    q_spec = pl.BlockSpec((None, None, tq, d),
                          lambda bi, qi, ki, _l=lq: (_l, bi, qi, 0))
    k_spec = pl.BlockSpec((None, None, tk, d),
                          lambda bi, qi, ki, _l=lk: (_l, bi, ki, 0))
    v_spec = pl.BlockSpec((None, None, tk, d),
                          lambda bi, qi, ki, _l=lv: (_l, bi, ki, 0))
    o_spec = pl.BlockSpec((None, tq, d), lambda bi, qi, ki: (bi, qi, 0))

    kernel = partial(_flash_attn_kernel, num_heads=num_heads, depth=depth,
                     kv_tile=tk, kv_len=sk, exp_dtype=exp_dtype)

    out = pl.pallas_call(
        kernel,
        out_shape=jax.ShapeDtypeStruct((bsz, sq_pad, d), out_dtype),
        grid_spec=pltpu.PrefetchScalarGridSpec(
            num_scalar_prefetch=0,
            grid=(bsz, sq_pad // tq, sk_pad // tk),
            in_specs=[q_spec, k_spec, v_spec],
            out_specs=o_spec,
            scratch_shapes=[
                pltpu.VMEM((num_heads, tq, 1), jnp.float32),  # running max m
                pltpu.VMEM((num_heads, tq, 1), jnp.float32),  # running sum l
                pltpu.VMEM((tq, d), jnp.float32),             # acc, all heads
            ],
        ),
        compiler_params=pltpu.CompilerParams(
            dimension_semantics=("parallel", "parallel", "arbitrary"),
            vmem_limit_bytes=_VMEM_LIMIT,
        ),
    )(q_in, k_in, v_in)
    return out[:, :sq] if sq_pad != sq else out


# ----------------------------------------------------------------------------
# Module wrapper
# ----------------------------------------------------------------------------
def init_params(key, d_model):
    keys = jax.random.split(key, 8)

    def lin(kw, kb):
        w = jax.random.normal(kw, (d_model, d_model), jnp.float32) * 0.05
        b = jax.random.normal(kb, (d_model,), jnp.float32) * 0.05
        return w, b

    return {
        "w_q": lin(keys[0], keys[1]),
        "w_k": lin(keys[2], keys[3]),
        "w_v": lin(keys[4], keys[5]),
        "out": lin(keys[6], keys[7]),
    }


def prepare_params(params, num_heads):
    """One-time weight prep (hoisted out of the forward): torch (out,in) ->
    (in,out), fold 1/sqrt(depth) into the Q projection, stack QKV, cast bf16."""
    (wq, bq), (wk, bk), (wv, bv) = params["w_q"], params["w_k"], params["w_v"]
    wo, bo = params["out"]
    d_model = wq.shape[0]
    depth = d_model // num_heads
    norm = 1.0 / sqrt(depth)

    wq_t = (wq.T * norm).astype(jnp.bfloat16)
    wk_t = wk.T.astype(jnp.bfloat16)
    wv_t = wv.T.astype(jnp.bfloat16)
    bq_s = (bq * norm).astype(jnp.float32)

    return {
        "num_heads": num_heads,
        "d_model": d_model,
        "w_qkv": jnp.stack([wq_t, wk_t, wv_t]),                      # (3, D, D)
        "b_qkv": jnp.stack([bq_s, bk, bv])[:, None, :].astype(jnp.float32),
        "w_q": wq_t, "b_q": bq_s.reshape(1, -1),
        "w_k": wk_t, "b_k": bk.reshape(1, -1).astype(jnp.float32),
        "w_v": wv_t, "b_v": bv.reshape(1, -1).astype(jnp.float32),
        "w_out": wo.T.astype(jnp.bfloat16),
        "b_out": bo.reshape(1, -1).astype(jnp.float32),
    }


def multi_head_attention(prep, Q, K, V, *, exp_dtype=jnp.bfloat16):
    """Forward pass matching torch MultiHeadAttention.forward (mask=None)."""
    num_heads = prep["num_heads"]
    d = prep["d_model"]
    b, sq, d2 = Q.shape
    assert d2 == d and d % num_heads == 0
    sk = K.shape[1]

    self_attn = (Q is K) and (K is V)
    tm_est = min(512, _round_up(b * sq, 8))

    if self_attn and _weight_resident_ok(d, d, tm_est):
        # Fused QKV -> packed (3, B, S, D); attention reads head slices straight
        # out of the packed array (no HBM slice/relayout passes).
        qkv = fused_qkv_projection(Q.reshape(b * sq, d),
                                   prep["w_qkv"], prep["b_qkv"])
        qkv = qkv.reshape(3, b, sq, d)
        ctx = attention_core(qkv, qkv, qkv, (0, 1, 2), num_heads,
                             exp_dtype=exp_dtype)
    else:
        q = linear(Q.reshape(b * sq, d), prep["w_q"], prep["b_q"])
        k = linear(K.reshape(b * sk, d), prep["w_k"], prep["b_k"])
        v = linear(V.reshape(b * sk, d), prep["w_v"], prep["b_v"])
        ctx = attention_core(q.reshape(1, b, sq, d), k.reshape(1, b, sk, d),
                             v.reshape(1, b, sk, d), (0, 0, 0), num_heads,
                             exp_dtype=exp_dtype)

    # Output projection (weight-resident when it fits).  f32 output to match
    # the torch module; pass out_dtype=jnp.bfloat16 to halve the final store.
    out = linear(ctx.reshape(b * sq, d), prep["w_out"], prep["b_out"],
                 out_dtype=jnp.float32)
    return out.reshape(b, sq, d)


# ----------------------------------------------------------------------------
# Pure-JAX f32 reference for correctness checking
# ----------------------------------------------------------------------------
def multi_head_attention_ref(params, Q, K, V, num_heads):
    b, sq, d = Q.shape
    depth = d // num_heads
    norm = 1.0 / sqrt(depth)
    lin = lambda x, wb: x @ wb[0].T + wb[1]
    q, k, v = lin(Q, params["w_q"]), lin(K, params["w_k"]), lin(V, params["w_v"])
    split = lambda x: x.reshape(x.shape[0], x.shape[1], num_heads, depth
                                ).transpose(0, 2, 1, 3)
    qh, kh, vh = split(q), split(k), split(v)
    scores = jnp.einsum("bhqd,bhkd->bhqk", qh, kh) * norm
    p = jax.nn.softmax(scores, axis=-1)
    ctx = jnp.einsum("bhqk,bhkd->bhqd", p, vh)
    ctx = ctx.transpose(0, 2, 1, 3).reshape(b, sq, d)
    return lin(ctx, params["out"])


if __name__ == "__main__":
    B, S, D, H = 2, 16, 128, 4   # depth = 32

    key = jax.random.PRNGKey(0)
    kq, kk, kv, kp = jax.random.split(key, 4)
    Q = jax.random.normal(kq, (B, S, D), jnp.float32)
    K = jax.random.normal(kk, (B, S, D), jnp.float32)
    V = jax.random.normal(kv, (B, S, D), jnp.float32)
    params = init_params(kp, D)
    prep = prepare_params(params, H)     # one-time weight prep (hoisted)

    # Cross-attention path (separate resident-weight projections).
    out = jax.block_until_ready(multi_head_attention(prep, Q, K, V))
    ref = multi_head_attention_ref(params, Q, K, V, H)
    assert out.shape == (B, S, D) and out.dtype == jnp.float32
    assert jnp.allclose(out, ref, atol=3e-2, rtol=3e-2), "mismatch vs reference"

    # Self-attention path (fused QKV projection, packed layout end-to-end).
    out_sa = jax.block_until_ready(multi_head_attention(prep, Q, Q, Q))
    ref_sa = multi_head_attention_ref(params, Q, Q, Q, H)
    assert jnp.allclose(out_sa, ref_sa, atol=3e-2, rtol=3e-2), "mismatch (fused QKV)"

    print("KERNEL_OK")
</pallas_src>

<mosaic_0001>
module attributes {stable_mosaic.version = 11 : i64} {
  func.func @_linear_resident_kernel(%arg0: i32, %arg1: memref<32x128xbf16, #tpu.memory_space<vmem>>, %arg2: memref<128x128xbf16, #tpu.memory_space<vmem>>, %arg3: memref<1x128xf32, #tpu.memory_space<vmem>>, %arg4: memref<32x128xbf16, #tpu.memory_space<vmem>>) attributes {dimension_semantics = [#tpu.dimension_semantics<parallel>], iteration_bounds = array<i64: 1>, scalar_prefetch = 0 : i64, scratch_operands = 0 : i64, tpu.core_type = #tpu.core_type<tc>, window_params = [{transform_indices = @transform_0, window_bounds = array<i64: 32, 128>}, {pipeline_mode = #tpu.pipeline_mode<synchronous>, transform_indices = @transform_1, window_bounds = array<i64: 128, 128>}, {pipeline_mode = #tpu.pipeline_mode<synchronous>, transform_indices = @transform_2, window_bounds = array<i64: 1, 128>}, {transform_indices = @transform_3, window_bounds = array<i64: 32, 128>}]} {
    %c0 = arith.constant 0 : index
    %c0_0 = arith.constant 0 : index
    %0 = vector.load %arg1[%c0, %c0_0] : memref<32x128xbf16, #tpu.memory_space<vmem>>, vector<32x128xbf16>
    %c0_1 = arith.constant 0 : index
    %c0_2 = arith.constant 0 : index
    %1 = vector.load %arg2[%c0_1, %c0_2] : memref<128x128xbf16, #tpu.memory_space<vmem>>, vector<128x128xbf16>
    %cst = arith.constant dense<0.000000e+00> : vector<32x128xf32>
    %2 = tpu.matmul %0, %1, %cst {dimension_numbers = #tpu.dot_dimension_numbers<[1], [0], [0], [1], [0, 0, 1, 1], [], []>} : vector<32x128xbf16>, vector<128x128xbf16>, vector<32x128xf32> -> vector<32x128xf32>
    %c0_3 = arith.constant 0 : index
    %c0_4 = arith.constant 0 : index
    %3 = vector.load %arg3[%c0_3, %c0_4] : memref<1x128xf32, #tpu.memory_space<vmem>>, vector<1x128xf32>
    %4 = vector.broadcast %3 : vector<1x128xf32> to vector<32x128xf32>
    %5 = arith.addf %2, %4 : vector<32x128xf32>
    %6 = arith.truncf %5 : vector<32x128xf32> to vector<32x128xbf16>
    %c0_5 = arith.constant 0 : index
    %c0_6 = arith.constant 0 : index
    %7 = vector.load %arg4[%c0_5, %c0_6] : memref<32x128xbf16, #tpu.memory_space<vmem>>, vector<32x128xbf16>
    tpu.vector_store %arg4[%c0_5, %c0_6], %6 {strides = array<i32>} : memref<32x128xbf16, #tpu.memory_space<vmem>>, vector<32x128xbf16>,
    return
  }
  func.func @transform_0(%arg0: i32) -> (i32, i32) {
    %c0_i32 = arith.constant 0 : i32
    %c0_i32_0 = arith.constant 0 : i32
    return %arg0, %c0_i32 : i32, i32
  }
  func.func @transform_1(%arg0: i32) -> (i32, i32) {
    %c0_i32 = arith.constant 0 : i32
    %c0_i32_0 = arith.constant 0 : i32
    %c0_i32_1 = arith.constant 0 : i32
    return %c0_i32, %c0_i32_0 : i32, i32
  }
  func.func @transform_2(%arg0: i32) -> (i32, i32) {
    %c0_i32 = arith.constant 0 : i32
    %c0_i32_0 = arith.constant 0 : i32
    %c0_i32_1 = arith.constant 0 : i32
    return %c0_i32, %c0_i32_0 : i32, i32
  }
  func.func @transform_3(%arg0: i32) -> (i32, i32) {
    %c0_i32 = arith.constant 0 : i32
    %c0_i32_0 = arith.constant 0 : i32
    return %arg0, %c0_i32 : i32, i32
  }
}

</mosaic_0001>

<llo_original>
// kernel: tpu_custom_call.1
$region0: #{tpu_custom_call.1}
  #allocation0 [shape = 'u32[]', space=smem, size = 0x4, offset = 0x4, fixed_abs, tag = 'smem constant byte address 0x4 - core index']
  #allocation1 [shape = 'u32[144,128]{1,0:T(1,128)}', space=vmem, size = 0x12000, scoped, tag = 'internal scratch']
  %s0 = inlined_call_operand.hbm [shape: bf16[32,128], index: 0, kind: input, shape index: {}]
  %s1 = inlined_call_operand.hbm [shape: bf16[128,128], index: 1, kind: input, shape index: {}]
  %s2 = inlined_call_operand.vmem [shape: f32[1,128], index: 2, kind: input, shape index: {}]
  %s3 = inlined_call_operand.hbm [shape: bf16[32,128], index: 3, kind: output, shape index: {}]
  %s4 = sld [smem:[#allocation0]]
  $region30: #{tpu_custom_call.1} parent=0
    _
  %s6 = ssub.s32 1, %s4
  %s7 = scalar_select 0, %s6, %s4
  $region1: #{tpu_custom_call.1} parent=0
    #allocation2 [shape = 'u8[8192]{0}', space=vmem, size = 0x2000, scoped, tag = 'input window, operand 0, single buffered']
    #allocation3 [shape = 's32[1]{0}', space=sflag, size = 0x4, scoped, tag = 'scoped memory for tpu_custom_call.1']
    #allocation4 [shape = 's32[1]{0}', space=sflag, size = 0x4, scoped, tag = 'scoped memory for tpu_custom_call.1']
    #allocation5 [shape = 'u8[32768]{0}', space=vmem, size = 0x8000, scoped, tag = 'input window, operand 1, single buffered']
    #allocation6 [shape = 's32[1]{0}', space=sflag, size = 0x4, scoped, tag = 'scoped memory for tpu_custom_call.1']
    #allocation7 [shape = 'u8[8192]{0}', space=vmem, size = 0x2000, scoped, tag = 'output window, operand 0, single buffered']
    %8 = vsyncpa [#allocation3], 0
    %9 = vsyncpa [#allocation6], 0
    %10 = vsyncpa [#allocation4], 0
    // Predicated region
    $region2: #{tpu_custom_call.1} parent=1 // pred_check
      _
    $region3: #{tpu_custom_call.1} parent=1 // pred_check_branch
      %12 = sbr.rel (0) target = $region5
    $region4: #{tpu_custom_call.1} parent=1 // pred_region
      %s14 = ssub.s32 256, 256
      %15 = vsyncadd [#allocation3], %s14
      %s16 = sshll.u32 [#allocation2], 4
      %s17 = int_to_ptr.vmem [resolvable:$true] %s16
      %22 = dma.hbm_to_vmem [thread:$0]  %s0, 256, %s17, [#allocation3], 64, 64, 4
    $region5: #{tpu_custom_call.1} parent=1 // pred_fallthru
      _
    // Predicated region
    $region6: #{tpu_custom_call.1} parent=1 // pred_check
      _
    $region7: #{tpu_custom_call.1} parent=1 // pred_check_branch
      %24 = sbr.rel (0) target = $region9
    $region8: #{tpu_custom_call.1} parent=1 // pred_region
      %s26 = ssub.s32 1024, 1024
      %27 = vsyncadd [#allocation6], %s26
      %s28 = sshll.u32 [#allocation5], 4
      %s29 = int_to_ptr.vmem [resolvable:$true] %s28
      %34 = dma.hbm_to_vmem [thread:$0]  %s1, 1024, %s29, [#allocation6], 64, 64, 4
    $region9: #{tpu_custom_call.1} parent=1 // pred_fallthru
      _
    // Predicated region
    $region10: #{tpu_custom_call.1} parent=1 // pred_check
      _
    $region11: #{tpu_custom_call.1} parent=1 // pred_check_branch
      %36 = sbr.rel (0) target = $region13
    $region12: #{tpu_custom_call.1} parent=1 // pred_region
      _
    $region13: #{tpu_custom_call.1} parent=1 // pred_fallthru
      _
    // Predicated region
    $region14: #{tpu_custom_call.1} parent=1 // pred_check
      _
    $region15: #{tpu_custom_call.1} parent=1 // pred_check_branch
      %38 = sbr.rel (0) target = $region17
    $region16: #{tpu_custom_call.1} parent=1 // pred_region
      %39 = dma.done [#allocation3], 256
    $region17: #{tpu_custom_call.1} parent=1 // pred_fallthru
      _
    // Predicated region
    $region18: #{tpu_custom_call.1} parent=1 // pred_check
      _
    $region19: #{tpu_custom_call.1} parent=1 // pred_check_branch
      %41 = sbr.rel (0) target = $region21
    $region20: #{tpu_custom_call.1} parent=1 // pred_region
      %42 = dma.done [#allocation6], 1024
    $region21: #{tpu_custom_call.1} parent=1 // pred_fallthru
      _
    %v44 = vld [vmem:[#allocation2] sm:$0xf]
    %v45 = vld [vmem:[#allocation2 + $0x4] sm:$0xf]
    %v46 = vld [vmem:[#allocation2 + $0x8] sm:$0xf]
    %v47 = vld [vmem:[#allocation2 + $0xc] sm:$0xf]
    %v48 = vld [vmem:[#allocation5] sm:$0xf]
    %v49 = vld [vmem:[#allocation5 + $0x4] sm:$0xf]
    %v50 = vld [vmem:[#allocation5 + $0x8] sm:$0xf]
    %v51 = vld [vmem:[#allocation5 + $0xc] sm:$0xf]
    %v52 = vld [vmem:[#allocation5 + $0x10] sm:$0xf]
    %v53 = vld [vmem:[#allocation5 + $0x14] sm:$0xf]
    %v54 = vld [vmem:[#allocation5 + $0x18] sm:$0xf]
    %v55 = vld [vmem:[#allocation5 + $0x1c] sm:$0xf]
    %v56 = vld [vmem:[#allocation5 + $0x20] sm:$0xf]
    %v57 = vld [vmem:[#allocation5 + $0x24] sm:$0xf]
    %v58 = vld [vmem:[#allocation5 + $0x28] sm:$0xf]
    %v59 = vld [vmem:[#allocation5 + $0x2c] sm:$0xf]
    %v60 = vld [vmem:[#allocation5 + $0x30] sm:$0xf]
    %v61 = vld [vmem:[#allocation5 + $0x34] sm:$0xf]
    %v62 = vld [vmem:[#allocation5 + $0x38] sm:$0xf]
    %v63 = vld [vmem:[#allocation5 + $0x3c] sm:$0xf]
    %v64 = vld [vmem:[%s2] sm:$0x1]
    %v66 = vlaneseq
    %v67 = vshrl.u32 %v66, 7
    %v68 = vsub.s32 0, %v67
    %v69 = vrot.slane %v64, %v68
    %v75 = vunpack.c.l.b16 %v44
    %v76 = vunpack.c.l.b16 %v45
    %v77 = vunpack.c.l.b16 %v46
    %v78 = vunpack.c.l.b16 %v47
    %v79 = vpack.c.b16 %v76, %v75
    %v80 = vpack.c.b16 %v78, %v77
    %v99 = vunpack.c.l.b16 %v48
    %v100 = vunpack.c.l.b16 %v49
    %v101 = vunpack.c.l.b16 %v50
    %v102 = vunpack.c.l.b16 %v51
    %v103 = vunpack.c.l.b16 %v52
    %v104 = vunpack.c.l.b16 %v53
    %v105 = vunpack.c.l.b16 %v54
    %v106 = vunpack.c.l.b16 %v55
    %v107 = vunpack.c.l.b16 %v56
    %v108 = vunpack.c.l.b16 %v57
    %v109 = vunpack.c.l.b16 %v58
    %v110 = vunpack.c.l.b16 %v59
    %v111 = vunpack.c.l.b16 %v60
    %v112 = vunpack.c.l.b16 %v61
    %v113 = vunpack.c.l.b16 %v62
    %v114 = vunpack.c.l.b16 %v63
    %v115 = vpack.c.b16 %v100, %v99
    %v116 = vpack.c.b16 %v102, %v101
    %v117 = vpack.c.b16 %v104, %v103
    %v118 = vpack.c.b16 %v106, %v105
    %v119 = vpack.c.b16 %v108, %v107
    %v120 = vpack.c.b16 %v110, %v109
    %v121 = vpack.c.b16 %v112, %v111
    %v122 = vpack.c.b16 %v114, %v113
    %131 = vmatprep.subr.bf16.mxu0 0
    %132 = vmatpush1.bf16.msra.mxu0 %v122
    %133 = vmatprep.subr.bf16.mxu0 0
    %134 = vmatpush1.bf16.msra.mxu0 %v121
    %135 = vmatprep.subr.bf16.mxu0 0
    %136 = vmatpush1.bf16.msra.mxu0 %v120
    %137 = vmatprep.subr.bf16.mxu0 0
    %138 = vmatpush1.bf16.msra.mxu0 %v119
    %139 = vmatprep.subr.bf16.mxu0 0
    %140 = vmatpush1.bf16.msra.mxu0 %v118
    %141 = vmatprep.subr.bf16.mxu0 0
    %142 = vmatpush1.bf16.msra.mxu0 %v117
    %143 = vmatprep.subr.bf16.mxu0 0
    %144 = vmatpush1.bf16.msra.mxu0 %v116
    %145 = vmatprep.subr.bf16.mxu0 0
    %146 = vmatpush1.bf16.msra.mxu0 %v115
    %147 = vmatprep.subr.bf16.mxu0 0
    %148 = vmatpush2.bf16.msra.mxu0 0
    %149 = vmatprep.subr.bf16.mxu0 0
    %150 = vmatpush2.bf16.msra.mxu0 0
    %151 = vmatprep.subr.bf16.mxu0 0
    %152 = vmatpush2.bf16.msra.mxu0 0
    %153 = vmatprep.subr.bf16.mxu0 0
    %154 = vmatpush2.bf16.msra.mxu0 0
    %155 = vmatprep.subr.bf16.mxu0 0
    %156 = vmatpush2.bf16.msra.mxu0 0
    %157 = vmatprep.subr.bf16.mxu0 0
    %158 = vmatpush2.bf16.msra.mxu0 0
    %159 = vmatprep.subr.bf16.mxu0 0
    %160 = vmatpush2.bf16.msra.mxu0 0
    %161 = vmatprep.subr.bf16.mxu0 0
    %162 = vmatpush2.bf16.msra.mxu0 0
    %163 = vmatprep.mubr.bf16.mxu0 0
    %164 = vmatmul.mubr.bf16.gmra.mxu0 %v79
    %v165 = vpop.f32.mrf.mxu0
    %v166 = vadd.f32 %v69, %v165
    %v167 = vpop.f32.mrf.mxu0
    %v168 = vpop.f32.mrf.mxu0
    %v169 = vadd.f32 %v69, %v168
    %v170 = vpop.f32.mrf.mxu0
    %171 = vmatprep.mubr.bf16.mxu0 0
    %172 = vmatmul.mubr.bf16.gmra.mxu0 %v80
    %v173 = vpop.f32.mrf.mxu0
    %v174 = vadd.f32 %v69, %v173
    %v175 = vpop.f32.mrf.mxu0
    %v176 = vpop.f32.mrf.mxu0
    %v177 = vadd.f32 %v69, %v176
    %v178 = vpop.f32.mrf.mxu0
    %179 = vdwg.mxu0
    %v180 = vpack.c.bf16 %v169, %v166
    %v181 = vpack.c.bf16 %v177, %v174
    %v184 = vunpack.c.l.b16 %v180
    %v185 = vunpack.c.h.b16 %v180
    %v186 = vunpack.c.l.b16 %v181
    %v187 = vunpack.c.h.b16 %v181
    %v188 = vpack.c.b16 %v184, %v184
    %v189 = vpack.c.b16 %v185, %v185
    %v190 = vpack.c.b16 %v186, %v186
    %v191 = vpack.c.b16 %v187, %v187
    %196 = vst [vmem:[#allocation7] sm:$0xf] %v188
    %197 = vst [vmem:[#allocation7 + $0x4] sm:$0xf] %v189
    %198 = vst [vmem:[#allocation7 + $0x8] sm:$0xf] %v190
    %199 = vst [vmem:[#allocation7 + $0xc] sm:$0xf] %v191
    // Predicated region
    $region22: #{tpu_custom_call.1} parent=1 // pred_check
      _
    $region23: #{tpu_custom_call.1} parent=1 // pred_check_branch
      %201 = sbr.rel (0) target = $region25
    $region24: #{tpu_custom_call.1} parent=1 // pred_region
      %s203 = ssub.s32 256, 256
      %204 = vsyncadd [#allocation4], %s203
      %s205 = sshll.u32 [#allocation7], 4
      %s206 = int_to_ptr.vmem [resolvable:$true] %s205
      %211 = dma.vmem_to_hbm [thread:$0]  %s206, 256, %s3, [#allocation4], 64, 64, 4
    $region25: #{tpu_custom_call.1} parent=1 // pred_fallthru
      _
    // Predicated region
    $region26: #{tpu_custom_call.1} parent=1 // pred_check
      _
    $region27: #{tpu_custom_call.1} parent=1 // pred_check_branch
      %213 = sbr.rel (0) target = $region29
    $region28: #{tpu_custom_call.1} parent=1 // pred_region
      %214 = dma.done [#allocation4], 256
    $region29: #{tpu_custom_call.1} parent=1 // pred_fallthru
      _
    %215 = vsyncpa [#allocation3], 1
    %216 = vsyncpa [#allocation6], 1
    %217 = vsyncpa [#allocation4], 1

</llo_original>
